<compile_context>
chip_gen: v5e
topology: v5e:2x2
jax: 0.10.0
libtpu: 0.0.40
codegen_flags: <defaults>
</compile_context>

<pallas_src>
import jax
import jax.numpy as jnp
from jax.experimental import pallas as pl
from jax.experimental.pallas import tpu as pltpu


def _make_mask_kernel(P: int, L: int):
    """Kernel for one (bs*n_vars)-row tile: cv over patch_len + descending cv rank."""
    # torch.std default is the unbiased estimator (ddof = 1).
    inv_lm1 = (1.0 / float(L - 1)) if L > 1 else float("nan")

    def kernel(x_ref, cv_ref, rank_ref):
        # x_ref block: (Bt, L, P) -- num_patch P on lanes, patch_len L on sublanes.
        x = x_ref[...]

        # --- coefficient of variation over patch_len --------------------------
        # Two-pass (centered) variance kept for bit-parity with torch's
        # unbiased std; the `dev` temporary is block-sized and accounted for
        # in the wrapper's VMEM budget.
        mean = jnp.mean(x, axis=1)                            # (Bt, P) sublane reduce
        dev = x - mean[:, None, :]
        var = jnp.sum(dev * dev, axis=1) * inv_lm1
        cv = jnp.sqrt(var) / (mean + 1e-6)                    # (Bt, P)
        cv_ref[...] = cv

        # --- descending rank of cv along the patch axis ------------------------
        # rank[p] = #{q: cv[q] > cv[p]} + #{q: cv[q] == cv[p] and q < p}
        # Single fused comparison pass; the O(P^2) intermediate is bounded by
        # the grid tile (Bt).  For very large num_patch a roll-based rank
        # would drop this to O(Bt*P); unnecessary at these sizes.
        tri = (jax.lax.broadcasted_iota(jnp.int32, (P, P), 1)
               < jax.lax.broadcasted_iota(jnp.int32, (P, P), 0))   # tri[p, q] = q < p
        cp = cv[:, :, None]                                   # p on sublanes
        cq = cv[:, None, :]                                   # q on lanes
        beats = (cq > cp) | ((cq == cp) & tri[None, :, :])    # (Bt, P, P)
        rank_ref[...] = jnp.sum(beats.astype(jnp.int32), axis=-1)   # (Bt, P)

    return kernel


def time_freq_masks(x, time_ratio=0.5, freq_ratio=0.4):
    """Pallas-computed cv + time/freq patch masks.

    x: [bs, num_patch, n_vars, patch_len] float32
    returns (cv, time_mask(bool), freq_mask(bool)) each [bs, num_patch, n_vars]
    """
    bs, P, V, L = x.shape
    k_time = int(P * time_ratio)
    k_freq = int(P * freq_ratio)

    # Layout plumbing: fold (bs, n_vars) into one leading axis, num_patch on
    # lanes, patch_len on sublanes.  Reshape after the transpose is free.
    BV = bs * V
    xt = (jnp.transpose(x, (0, 2, 3, 1))
          .astype(jnp.float32)
          .reshape(BV, L, P))

    # --- tile sizing ----------------------------------------------------------
    try:
        vmem_cap = int(pltpu.get_tpu_info().vmem_capacity_bytes)
    except Exception:
        vmem_cap = 64 * 2**20                 # conservative: v7x per-core VMEM
    # headroom for Mosaic internal scratch: ~50 MiB on v7x, ~100 MiB on v5e/v6e
    safe_limit = min(vmem_cap - 12 * 2**20, int(vmem_cap * 0.8))

    # Honest per-row footprint: double-buffered input block, the dev / dev*dev
    # block-sized temporaries, the (P,P) compare + int32 reduce intermediates,
    # and the (double-buffered) cv / rank output rows.
    bytes_per_row = (2 * L * P * 4            # input block x2 (pipelining)
                     + 2 * L * P * 4          # dev, dev*dev temporaries
                     + 2 * P * P * 4          # bool compare + int32 rank reduce
                     + 6 * P * 4)             # mean/cv + double-buffered outputs
    budget = max(2 * 2**20, safe_limit - 2 * 2**20)
    bv_tile = max(1, min(BV, budget // bytes_per_row))

    # Target >= 4 grid steps (>= 2 per v7x TensorCore; DMA/compute overlap on
    # all parts) as long as tiles stay DMA-friendly (>= ~1 MiB).
    row_bytes = L * P * 4
    min_tile_rows = max(1, pl.cdiv(1 * 2**20, row_bytes))
    for steps in (4, 2):
        cand = pl.cdiv(BV, steps)
        if cand >= min_tile_rows and cand < bv_tile:
            bv_tile = cand
            break

    if bv_tile < BV:
        # keep the output block's sublane dim a multiple of 8
        bv_tile = min(BV, max(8, (bv_tile // 8) * 8))
    # Non-divisible BV: full-size block, cdiv grid -- out-of-bounds rows of the
    # tail block compute garbage but their output writes are dropped and no
    # cross-row dependency exists.
    grid_bv = pl.cdiv(BV, bv_tile)

    est_vmem = bv_tile * bytes_per_row + (1 << 20)      # + Mosaic scratch margin
    vmem_limit = (int(min(safe_limit, max(32 * 2**20, int(1.25 * est_vmem))))
                  if est_vmem > 16 * 2**20 else None)

    kernel = _make_mask_kernel(P, L)

    cv_bv, rank_bv = pl.pallas_call(
        kernel,
        out_shape=(
            jax.ShapeDtypeStruct((BV, P), jnp.float32),
            jax.ShapeDtypeStruct((BV, P), jnp.int32),
        ),
        grid_spec=pltpu.PrefetchScalarGridSpec(
            num_scalar_prefetch=0,
            grid=(grid_bv,),
            in_specs=[pl.BlockSpec((bv_tile, L, P), lambda i: (i, 0, 0))],
            out_specs=[
                pl.BlockSpec((bv_tile, P), lambda i: (i, 0)),
                pl.BlockSpec((bv_tile, P), lambda i: (i, 0)),
            ],
        ),
        compiler_params=pltpu.CompilerParams(
            dimension_semantics=("parallel",),
            vmem_limit_bytes=vmem_limit,
        ),
    )(xt)

    # back to the reference [bs, num_patch, n_vars] layout; the threshold
    # compares fuse for free in XLA (single rank output drives both masks).
    cv = jnp.transpose(cv_bv.reshape(bs, V, P), (0, 2, 1))
    rank = jnp.transpose(rank_bv.reshape(bs, V, P), (0, 2, 1))
    time_mask = rank >= k_time   # True = kept, False = masked (top-k cv)
    freq_mask = rank >= k_freq
    return cv, time_mask, freq_mask


def time_freq_masking_forward(x, training=False, time_ratio=0.5, freq_ratio=0.4):
    """Mirror of TimeFreqMasking.forward."""
    if not training:
        # eval branch of the reference module: identity + (None, None)
        return x, None, None

    cv, time_mask, freq_mask = time_freq_masks(x, time_ratio, freq_ratio)
    # TODO(synk): the training branch's encoder/decoder/reconstruction path
    # (patch2emb, time_encoder, time_decoder, emb2patch, *_mask_token, d_model)
    # is never defined in TimeFreqMasking.__init__, so it has no well-defined
    # semantics to translate; only the cv + top-k patch-mask hot path is
    # implemented (in Pallas) and returned here alongside x.
    return x, (cv, time_mask), (cv, freq_mask)


# --------------------------- pure-JAX reference ------------------------------
def _ref_cv(x):
    mean = jnp.mean(x, axis=3)
    std = jnp.std(x, axis=3, ddof=1)
    return std / (mean + 1e-6)


def _ref_mask(cv, k):
    # cv: (bs, P, V) -> mask True = kept
    bs, P, V = cv.shape
    cvt = jnp.transpose(cv, (0, 2, 1))                # (bs, V, P)
    _, idx = jax.lax.top_k(cvt, k)                    # (bs, V, k)
    masked = jnp.any(idx[..., None] == jnp.arange(P)[None, None, None, :], axis=2)
    return ~jnp.transpose(masked, (0, 2, 1))          # (bs, P, V)


if __name__ == "__main__":
    bs, num_patch, n_vars, patch_len = 2, 8, 4, 12   # patch_size default = 12
    time_ratio, freq_ratio = 0.5, 0.4

    key = jax.random.PRNGKey(0)
    x = jax.random.normal(key, (bs, num_patch, n_vars, patch_len), jnp.float32) + 1.5

    # eval-mode forward (exact reference semantics)
    y, t_out, f_out = time_freq_masking_forward(x, training=False)
    assert t_out is None and f_out is None
    assert jnp.array_equal(y, x)

    # training-mode masking hot path (Pallas kernel)
    cv, tmask, fmask = time_freq_masks(x, time_ratio, freq_ratio)
    cv, tmask, fmask = jax.block_until_ready((cv, tmask, fmask))

    # verify against a pure-JAX reference
    cv_ref = _ref_cv(x)
    tmask_ref = _ref_mask(cv_ref, int(num_patch * time_ratio))
    fmask_ref = _ref_mask(cv_ref, int(num_patch * freq_ratio))

    assert jnp.allclose(cv, cv_ref, rtol=1e-5, atol=1e-5), "cv mismatch"
    assert jnp.array_equal(tmask, tmask_ref), "time mask mismatch"
    assert jnp.array_equal(fmask, fmask_ref), "freq mask mismatch"

    print("KERNEL_OK")
</pallas_src>

<mosaic_0001>
module attributes {stable_mosaic.version = 11 : i64} {
  func.func @kernel(%arg0: i32, %arg1: memref<8x12x8xf32, #tpu.memory_space<vmem>>, %arg2: memref<8x8xf32, #tpu.memory_space<vmem>>, %arg3: memref<8x8xi32, #tpu.memory_space<vmem>>) attributes {dimension_semantics = [#tpu.dimension_semantics<parallel>], iteration_bounds = array<i64: 1>, scalar_prefetch = 0 : i64, scratch_operands = 0 : i64, tpu.core_type = #tpu.core_type<tc>, window_params = [{transform_indices = @transform_0, window_bounds = array<i64: 8, 12, 8>}, {transform_indices = @transform_1, window_bounds = array<i64: 8, 8>}, {transform_indices = @transform_2, window_bounds = array<i64: 8, 8>}]} {
    %c0 = arith.constant 0 : index
    %c0_0 = arith.constant 0 : index
    %c0_1 = arith.constant 0 : index
    %0 = vector.load %arg1[%c0, %c0_0, %c0_1] : memref<8x12x8xf32, #tpu.memory_space<vmem>>, vector<8x12x8xf32>
    %cst = arith.constant dense<0.000000e+00> : vector<8x8xf32>
    %1 = vector.multi_reduction <add>, %0, %cst [1] : vector<8x12x8xf32> to vector<8x8xf32>
    %cst_2 = arith.constant 1.200000e+01 : f32
    %2 = vector.broadcast %cst_2 : f32 to vector<8x8xf32>
    %3 = arith.divf %1, %2 : vector<8x8xf32>
    %4 = vector.shape_cast %3 : vector<8x8xf32> to vector<8x1x8xf32>
    %5 = vector.broadcast %4 : vector<8x1x8xf32> to vector<8x12x8xf32>
    %6 = arith.subf %0, %5 : vector<8x12x8xf32>
    %7 = arith.mulf %6, %6 : vector<8x12x8xf32>
    %cst_3 = arith.constant dense<0.000000e+00> : vector<8x8xf32>
    %8 = vector.multi_reduction <add>, %7, %cst_3 [1] : vector<8x12x8xf32> to vector<8x8xf32>
    %cst_4 = arith.constant 0.0909090936 : f32
    %9 = vector.broadcast %cst_4 : f32 to vector<8x8xf32>
    %10 = arith.mulf %8, %9 : vector<8x8xf32>
    %11 = math.sqrt %10 : vector<8x8xf32>
    %cst_5 = arith.constant 9.99999997E-7 : f32
    %12 = vector.broadcast %cst_5 : f32 to vector<8x8xf32>
    %13 = arith.addf %3, %12 : vector<8x8xf32>
    %14 = arith.divf %11, %13 : vector<8x8xf32>
    %c0_6 = arith.constant 0 : index
    %c0_7 = arith.constant 0 : index
    %15 = vector.load %arg2[%c0_6, %c0_7] : memref<8x8xf32, #tpu.memory_space<vmem>>, vector<8x8xf32>
    tpu.vector_store %arg2[%c0_6, %c0_7], %14 {strides = array<i32>} : memref<8x8xf32, #tpu.memory_space<vmem>>, vector<8x8xf32>,
    %16 = tpu.iota {dimensions = array<i32: 1>} : vector<8x8xi32>
    %17 = tpu.iota {dimensions = array<i32: 0>} : vector<8x8xi32>
    %18 = arith.cmpi slt, %16, %17 : vector<8x8xi32>
    %19 = vector.shape_cast %14 : vector<8x8xf32> to vector<8x8x1xf32>
    %20 = vector.shape_cast %14 : vector<8x8xf32> to vector<8x1x8xf32>
    %21 = vector.broadcast %20 : vector<8x1x8xf32> to vector<8x8x8xf32>
    %22 = vector.broadcast %19 : vector<8x8x1xf32> to vector<8x8x8xf32>
    %23 = arith.cmpf ogt, %21, %22 : vector<8x8x8xf32>
    %24 = vector.broadcast %20 : vector<8x1x8xf32> to vector<8x8x8xf32>
    %25 = vector.broadcast %19 : vector<8x8x1xf32> to vector<8x8x8xf32>
    %26 = arith.cmpf oeq, %24, %25 : vector<8x8x8xf32>
    %27 = vector.shape_cast %18 : vector<8x8xi1> to vector<1x8x8xi1>
    %28 = vector.broadcast %27 : vector<1x8x8xi1> to vector<8x8x8xi1>
    %29 = arith.andi %26, %28 : vector<8x8x8xi1>
    %30 = arith.ori %23, %29 : vector<8x8x8xi1>
    %31 = arith.extui %30 : vector<8x8x8xi1> to vector<8x8x8xi32>
    %cst_8 = arith.constant dense<0> : vector<8x8xi32>
    %32 = vector.multi_reduction <add>, %31, %cst_8 [2] : vector<8x8x8xi32> to vector<8x8xi32>
    %c0_9 = arith.constant 0 : index
    %c0_10 = arith.constant 0 : index
    %33 = vector.load %arg3[%c0_9, %c0_10] : memref<8x8xi32, #tpu.memory_space<vmem>>, vector<8x8xi32>
    tpu.vector_store %arg3[%c0_9, %c0_10], %32 {strides = array<i32>} : memref<8x8xi32, #tpu.memory_space<vmem>>, vector<8x8xi32>,
    return
  }
  func.func @transform_0(%arg0: i32) -> (i32, i32, i32) {
    %c0_i32 = arith.constant 0 : i32
    %c0_i32_0 = arith.constant 0 : i32
    %c0_i32_1 = arith.constant 0 : i32
    return %arg0, %c0_i32, %c0_i32_0 : i32, i32, i32
  }
  func.func @transform_1(%arg0: i32) -> (i32, i32) {
    %c0_i32 = arith.constant 0 : i32
    %c0_i32_0 = arith.constant 0 : i32
    return %arg0, %c0_i32 : i32, i32
  }
  func.func @transform_2(%arg0: i32) -> (i32, i32) {
    %c0_i32 = arith.constant 0 : i32
    %c0_i32_0 = arith.constant 0 : i32
    return %arg0, %c0_i32 : i32, i32
  }
}

</mosaic_0001>

<llo_original>
// kernel: tpu_custom_call.1
$region0: #{tpu_custom_call.1}
  #allocation0 [shape = 'u32[]', space=smem, size = 0x4, offset = 0x4, fixed_abs, tag = 'smem constant byte address 0x4 - core index']
  #allocation1 [shape = 'u32[72,128]{1,0:T(1,128)}', space=vmem, size = 0x9000, scoped, tag = 'internal scratch']
  %s0 = inlined_call_operand.vmem [shape: f32[8,12,8], index: 0, kind: input, shape index: {}]
  %s1 = inlined_call_operand.hbm [shape: f32[8,8], index: 1, kind: output, shape index: {0}]
  %s2 = inlined_call_operand.hbm [shape: s32[8,8], index: 2, kind: output, shape index: {1}]
  %3 = xla_tuple %s1, %s2
  %s4 = sld [smem:[#allocation0]]
  $region22: #{tpu_custom_call.1} parent=0
    _
  %s6 = ssub.s32 1, %s4
  %s7 = scalar_select 0, %s6, %s4
  $region1: #{tpu_custom_call.1} parent=0
    #allocation2 [shape = 'u8[4096]{0}', space=vmem, size = 0x1000, scoped, tag = 'output window, operand 0, single buffered']
    #allocation3 [shape = 's32[1]{0}', space=sflag, size = 0x4, scoped, tag = 'scoped memory for tpu_custom_call.1']
    #allocation4 [shape = 'u8[4096]{0}', space=vmem, size = 0x1000, scoped, tag = 'output window, operand 1, single buffered']
    #allocation5 [shape = 's32[1]{0}', space=sflag, size = 0x4, scoped, tag = 'scoped memory for tpu_custom_call.1']
    %8 = vsyncpa [#allocation3], 0
    %9 = vsyncpa [#allocation5], 0
    // Predicated region
    $region2: #{tpu_custom_call.1} parent=1 // pred_check
      _
    $region3: #{tpu_custom_call.1} parent=1 // pred_check_branch
      %11 = sbr.rel (0) target = $region5
    $region4: #{tpu_custom_call.1} parent=1 // pred_region
      _
    $region5: #{tpu_custom_call.1} parent=1 // pred_fallthru
      _
    %v12 = vld [vmem:[%s0] sm:$0xff]
    %v13 = vld [vmem:[%s0 + $0x8] sm:$0xf]
    %v14 = vld [vmem:[%s0 + $0x10] sm:$0xff]
    %v15 = vld [vmem:[%s0 + $0x18] sm:$0xf]
    %v16 = vld [vmem:[%s0 + $0x20] sm:$0xff]
    %v17 = vld [vmem:[%s0 + $0x28] sm:$0xf]
    %v18 = vld [vmem:[%s0 + $0x30] sm:$0xff]
    %v19 = vld [vmem:[%s0 + $0x38] sm:$0xf]
    %v20 = vld [vmem:[%s0 + $0x40] sm:$0xff]
    %v21 = vld [vmem:[%s0 + $0x48] sm:$0xf]
    %v22 = vld [vmem:[%s0 + $0x50] sm:$0xff]
    %v23 = vld [vmem:[%s0 + $0x58] sm:$0xf]
    %v24 = vld [vmem:[%s0 + $0x60] sm:$0xff]
    %v25 = vld [vmem:[%s0 + $0x68] sm:$0xf]
    %v26 = vld [vmem:[%s0 + $0x70] sm:$0xff]
    %v27 = vld [vmem:[%s0 + $0x78] sm:$0xf]
    %vm28 = vcmask 64512
    %v29 = vsel %vm28, %v12, 0.0
    %vm30 = vcmask 60416
    %v31 = vsel %vm30, %v13, 0.0
    %v32 = vadd.f32 %v29, %v31
    %v33 = vrot.slane %v32, 4
    %v34 = vadd.f32 %v32, %v33
    %v35 = vrot.slane %v34, 2
    %v36 = vadd.f32 %v34, %v35
    %v37 = vrot.slane %v36, 1
    %v38 = vadd.f32 %v36, %v37
    %v39 = vsel %vm28, %v14, 0.0
    %v40 = vsel %vm30, %v15, 0.0
    %v41 = vadd.f32 %v39, %v40
    %v42 = vrot.slane %v41, 4
    %v43 = vadd.f32 %v41, %v42
    %v44 = vrot.slane %v43, 2
    %v45 = vadd.f32 %v43, %v44
    %v46 = vrot.slane %v45, 1
    %v47 = vadd.f32 %v45, %v46
    %v48 = vsel %vm28, %v16, 0.0
    %v49 = vsel %vm30, %v17, 0.0
    %v50 = vadd.f32 %v48, %v49
    %v51 = vrot.slane %v50, 4
    %v52 = vadd.f32 %v50, %v51
    %v53 = vrot.slane %v52, 2
    %v54 = vadd.f32 %v52, %v53
    %v55 = vrot.slane %v54, 1
    %v56 = vadd.f32 %v54, %v55
    %v57 = vsel %vm28, %v18, 0.0
    %v58 = vsel %vm30, %v19, 0.0
    %v59 = vadd.f32 %v57, %v58
    %v60 = vrot.slane %v59, 4
    %v61 = vadd.f32 %v59, %v60
    %v62 = vrot.slane %v61, 2
    %v63 = vadd.f32 %v61, %v62
    %v64 = vrot.slane %v63, 1
    %v65 = vadd.f32 %v63, %v64
    %v66 = vsel %vm28, %v20, 0.0
    %v67 = vsel %vm30, %v21, 0.0
    %v68 = vadd.f32 %v66, %v67
    %v69 = vrot.slane %v68, 4
    %v70 = vadd.f32 %v68, %v69
    %v71 = vrot.slane %v70, 2
    %v72 = vadd.f32 %v70, %v71
    %v73 = vrot.slane %v72, 1
    %v74 = vadd.f32 %v72, %v73
    %v75 = vsel %vm28, %v22, 0.0
    %v76 = vsel %vm30, %v23, 0.0
    %v77 = vadd.f32 %v75, %v76
    %v78 = vrot.slane %v77, 4
    %v79 = vadd.f32 %v77, %v78
    %v80 = vrot.slane %v79, 2
    %v81 = vadd.f32 %v79, %v80
    %v82 = vrot.slane %v81, 1
    %v83 = vadd.f32 %v81, %v82
    %v84 = vsel %vm28, %v24, 0.0
    %v85 = vsel %vm30, %v25, 0.0
    %v86 = vadd.f32 %v84, %v85
    %v87 = vrot.slane %v86, 4
    %v88 = vadd.f32 %v86, %v87
    %v89 = vrot.slane %v88, 2
    %v90 = vadd.f32 %v88, %v89
    %v91 = vrot.slane %v90, 1
    %v92 = vadd.f32 %v90, %v91
    %v93 = vsel %vm28, %v26, 0.0
    %v94 = vsel %vm30, %v27, 0.0
    %v95 = vadd.f32 %v93, %v94
    %v96 = vrot.slane %v95, 4
    %v97 = vadd.f32 %v95, %v96
    %v98 = vrot.slane %v97, 2
    %v99 = vadd.f32 %v97, %v98
    %v100 = vrot.slane %v99, 1
    %v101 = vadd.f32 %v99, %v100
    %v102 = vrcp.pop 12.0
    %v103 = vmul.f32 12.0, %v102
    %v104 = vsub.f32 1.0, %v103
    %v105 = vmul.f32 %v102, %v104
    %v106 = vadd.f32 %v102, %v105
    %vm107 = vweird.f32 %v102
    %v108 = vsel %vm107, %v102, %v106
    %v109 = vmul.f32 %v38, %v108
    %v110 = vmul.f32 %v47, %v108
    %v111 = vmul.f32 %v56, %v108
    %v112 = vmul.f32 %v65, %v108
    %v113 = vmul.f32 %v74, %v108
    %v114 = vmul.f32 %v83, %v108
    %v115 = vmul.f32 %v92, %v108
    %v116 = vmul.f32 %v101, %v108
    %v117 = vsub.f32 %v12, %v109
    %v118 = vsub.f32 %v13, %v109
    %v119 = vsub.f32 %v14, %v110
    %v120 = vsub.f32 %v15, %v110
    %v121 = vsub.f32 %v16, %v111
    %v122 = vsub.f32 %v17, %v111
    %v123 = vsub.f32 %v18, %v112
    %v124 = vsub.f32 %v19, %v112
    %v125 = vsub.f32 %v20, %v113
    %v126 = vsub.f32 %v21, %v113
    %v127 = vsub.f32 %v22, %v114
    %v128 = vsub.f32 %v23, %v114
    %v129 = vsub.f32 %v24, %v115
    %v130 = vsub.f32 %v25, %v115
    %v131 = vsub.f32 %v26, %v116
    %v132 = vsub.f32 %v27, %v116
    %v133 = vmul.f32 %v117, %v117
    %v134 = vmul.f32 %v118, %v118
    %v135 = vmul.f32 %v119, %v119
    %v136 = vmul.f32 %v120, %v120
    %v137 = vmul.f32 %v121, %v121
    %v138 = vmul.f32 %v122, %v122
    %v139 = vmul.f32 %v123, %v123
    %v140 = vmul.f32 %v124, %v124
    %v141 = vmul.f32 %v125, %v125
    %v142 = vmul.f32 %v126, %v126
    %v143 = vmul.f32 %v127, %v127
    %v144 = vmul.f32 %v128, %v128
    %v145 = vmul.f32 %v129, %v129
    %v146 = vmul.f32 %v130, %v130
    %v147 = vmul.f32 %v131, %v131
    %v148 = vmul.f32 %v132, %v132
    %v149 = vsel %vm28, %v133, 0.0
    %v150 = vsel %vm30, %v134, 0.0
    %v151 = vadd.f32 %v149, %v150
    %v152 = vrot.slane %v151, 4
    %v153 = vadd.f32 %v151, %v152
    %v154 = vrot.slane %v153, 2
    %v155 = vadd.f32 %v153, %v154
    %v156 = vrot.slane %v155, 1
    %v157 = vadd.f32 %v155, %v156
    %v158 = vsel %vm28, %v135, 0.0
    %v159 = vsel %vm30, %v136, 0.0
    %v160 = vadd.f32 %v158, %v159
    %v161 = vrot.slane %v160, 4
    %v162 = vadd.f32 %v160, %v161
    %v163 = vrot.slane %v162, 2
    %v164 = vadd.f32 %v162, %v163
    %v165 = vrot.slane %v164, 1
    %v166 = vadd.f32 %v164, %v165
    %v167 = vsel %vm28, %v137, 0.0
    %v168 = vsel %vm30, %v138, 0.0
    %v169 = vadd.f32 %v167, %v168
    %v170 = vrot.slane %v169, 4
    %v171 = vadd.f32 %v169, %v170
    %v172 = vrot.slane %v171, 2
    %v173 = vadd.f32 %v171, %v172
    %v174 = vrot.slane %v173, 1
    %v175 = vadd.f32 %v173, %v174
    %v176 = vsel %vm28, %v139, 0.0
    %v177 = vsel %vm30, %v140, 0.0
    %v178 = vadd.f32 %v176, %v177
    %v179 = vrot.slane %v178, 4
    %v180 = vadd.f32 %v178, %v179
    %v181 = vrot.slane %v180, 2
    %v182 = vadd.f32 %v180, %v181
    %v183 = vrot.slane %v182, 1
    %v184 = vadd.f32 %v182, %v183
    %v185 = vsel %vm28, %v141, 0.0
    %v186 = vsel %vm30, %v142, 0.0
    %v187 = vadd.f32 %v185, %v186
    %v188 = vrot.slane %v187, 4
    %v189 = vadd.f32 %v187, %v188
    %v190 = vrot.slane %v189, 2
    %v191 = vadd.f32 %v189, %v190
    %v192 = vrot.slane %v191, 1
    %v193 = vadd.f32 %v191, %v192
    %v194 = vsel %vm28, %v143, 0.0
    %v195 = vsel %vm30, %v144, 0.0
    %v196 = vadd.f32 %v194, %v195
    %v197 = vrot.slane %v196, 4
    %v198 = vadd.f32 %v196, %v197
    %v199 = vrot.slane %v198, 2
    %v200 = vadd.f32 %v198, %v199
    %v201 = vrot.slane %v200, 1
    %v202 = vadd.f32 %v200, %v201
    %v203 = vsel %vm28, %v145, 0.0
    %v204 = vsel %vm30, %v146, 0.0
    %v205 = vadd.f32 %v203, %v204
    %v206 = vrot.slane %v205, 4
    %v207 = vadd.f32 %v205, %v206
    %v208 = vrot.slane %v207, 2
    %v209 = vadd.f32 %v207, %v208
    %v210 = vrot.slane %v209, 1
    %v211 = vadd.f32 %v209, %v210
    %v212 = vsel %vm28, %v147, 0.0
    %v213 = vsel %vm30, %v148, 0.0
    %v214 = vadd.f32 %v212, %v213
    %v215 = vrot.slane %v214, 4
    %v216 = vadd.f32 %v214, %v215
    %v217 = vrot.slane %v216, 2
    %v218 = vadd.f32 %v216, %v217
    %v219 = vrot.slane %v218, 1
    %v220 = vadd.f32 %v218, %v219
    %v221 = vmul.f32 %v157, 0.09090909
    %v222 = vmul.f32 %v166, 0.09090909
    %v223 = vmul.f32 %v175, 0.09090909
    %v224 = vmul.f32 %v184, 0.09090909
    %v225 = vmul.f32 %v193, 0.09090909
    %v226 = vmul.f32 %v202, 0.09090909
    %v227 = vmul.f32 %v211, 0.09090909
    %v228 = vmul.f32 %v220, 0.09090909
    %v229 = vrsqrt.pop %v221
    %v230 = vmul.f32 %v229, %v221
    %v231 = vmul.f32 %v230, %v229
    %v232 = vmul.f32 0.5, %v231
    %v233 = vsub.f32 1.5, %v232
    %v234 = vmul.f32 %v229, %v233
    %v235 = vmul.f32 %v221, %v234
    %vm236 = vcmp.eq.f32.partialorder %v221, inf
    %v237 = vsel %vm236, %v221, %v235
    %vm238 = vcmp.eq.f32.partialorder %v221, 0.0
    %v239 = vand.u32 %v221, 2147483648
    %v240 = vsel %vm238, %v239, %v237
    %v241 = vrsqrt.pop %v222
    %v242 = vmul.f32 %v241, %v222
    %v243 = vmul.f32 %v242, %v241
    %v244 = vmul.f32 0.5, %v243
    %v245 = vsub.f32 1.5, %v244
    %v246 = vmul.f32 %v241, %v245
    %v247 = vmul.f32 %v222, %v246
    %vm248 = vcmp.eq.f32.partialorder %v222, inf
    %v249 = vsel %vm248, %v222, %v247
    %vm250 = vcmp.eq.f32.partialorder %v222, 0.0
    %v251 = vand.u32 %v222, 2147483648
    %v252 = vsel %vm250, %v251, %v249
    %v253 = vrsqrt.pop %v223
    %v254 = vmul.f32 %v253, %v223
    %v255 = vmul.f32 %v254, %v253
    %v256 = vmul.f32 0.5, %v255
    %v257 = vsub.f32 1.5, %v256
    %v258 = vmul.f32 %v253, %v257
    %v259 = vmul.f32 %v223, %v258
    %vm260 = vcmp.eq.f32.partialorder %v223, inf
    %v261 = vsel %vm260, %v223, %v259
    %vm262 = vcmp.eq.f32.partialorder %v223, 0.0
    %v263 = vand.u32 %v223, 2147483648
    %v264 = vsel %vm262, %v263, %v261
    %v265 = vrsqrt.pop %v224
    %v266 = vmul.f32 %v265, %v224
    %v267 = vmul.f32 %v266, %v265
    %v268 = vmul.f32 0.5, %v267
    %v269 = vsub.f32 1.5, %v268
    %v270 = vmul.f32 %v265, %v269
    %v271 = vmul.f32 %v224, %v270
    %vm272 = vcmp.eq.f32.partialorder %v224, inf
    %v273 = vsel %vm272, %v224, %v271
    %vm274 = vcmp.eq.f32.partialorder %v224, 0.0
    %v275 = vand.u32 %v224, 2147483648
    %v276 = vsel %vm274, %v275, %v273
    %v277 = vrsqrt.pop %v225
    %v278 = vmul.f32 %v277, %v225
    %v279 = vmul.f32 %v278, %v277
    %v280 = vmul.f32 0.5, %v279
    %v281 = vsub.f32 1.5, %v280
    %v282 = vmul.f32 %v277, %v281
    %v283 = vmul.f32 %v225, %v282
    %vm284 = vcmp.eq.f32.partialorder %v225, inf
    %v285 = vsel %vm284, %v225, %v283
    %vm286 = vcmp.eq.f32.partialorder %v225, 0.0
    %v287 = vand.u32 %v225, 2147483648
    %v288 = vsel %vm286, %v287, %v285
    %v289 = vrsqrt.pop %v226
    %v290 = vmul.f32 %v289, %v226
    %v291 = vmul.f32 %v290, %v289
    %v292 = vmul.f32 0.5, %v291
    %v293 = vsub.f32 1.5, %v292
    %v294 = vmul.f32 %v289, %v293
    %v295 = vmul.f32 %v226, %v294
    %vm296 = vcmp.eq.f32.partialorder %v226, inf
    %v297 = vsel %vm296, %v226, %v295
    %vm298 = vcmp.eq.f32.partialorder %v226, 0.0
    %v299 = vand.u32 %v226, 2147483648
    %v300 = vsel %vm298, %v299, %v297
    %v301 = vrsqrt.pop %v227
    %v302 = vmul.f32 %v301, %v227
    %v303 = vmul.f32 %v302, %v301
    %v304 = vmul.f32 0.5, %v303
    %v305 = vsub.f32 1.5, %v304
    %v306 = vmul.f32 %v301, %v305
    %v307 = vmul.f32 %v227, %v306
    %vm308 = vcmp.eq.f32.partialorder %v227, inf
    %v309 = vsel %vm308, %v227, %v307
    %vm310 = vcmp.eq.f32.partialorder %v227, 0.0
    %v311 = vand.u32 %v227, 2147483648
    %v312 = vsel %vm310, %v311, %v309
    %v313 = vrsqrt.pop %v228
    %v314 = vmul.f32 %v313, %v228
    %v315 = vmul.f32 %v314, %v313
    %v316 = vmul.f32 0.5, %v315
    %v317 = vsub.f32 1.5, %v316
    %v318 = vmul.f32 %v313, %v317
    %v319 = vmul.f32 %v228, %v318
    %vm320 = vcmp.eq.f32.partialorder %v228, inf
    %v321 = vsel %vm320, %v228, %v319
    %vm322 = vcmp.eq.f32.partialorder %v228, 0.0
    %v323 = vand.u32 %v228, 2147483648
    %v324 = vsel %vm322, %v323, %v321
    %v325 = vadd.f32 %v109, 1e-06
    %v326 = vadd.f32 %v110, 1e-06
    %v327 = vadd.f32 %v111, 1e-06
    %v328 = vadd.f32 %v112, 1e-06
    %v329 = vadd.f32 %v113, 1e-06
    %v330 = vadd.f32 %v114, 1e-06
    %v331 = vadd.f32 %v115, 1e-06
    %v332 = vadd.f32 %v116, 1e-06
    %v333 = vrcp.pop %v325
    %v334 = vmul.f32 %v325, %v333
    %v335 = vsub.f32 1.0, %v334
    %v336 = vmul.f32 %v333, %v335
    %v337 = vadd.f32 %v333, %v336
    %vm338 = vweird.f32 %v325
    %vm339 = vweird.f32 %v333
    %vm340 = vmor %vm338, %vm339
    %v341 = vsel %vm340, %v333, %v337
    %v342 = vand.u32 2147483647, %v325
    %vm343 = vcmp.eq.f32.partialorder %v342, 8.507059e+37
    %v344 = vand.u32 %v325, 2147483648
    %v345 = vor.u32 1.1754944e-38, %v344
    %v346 = vsel %vm343, %v345, %v341
    %v347 = vmul.f32 %v240, %v346
    %v348 = vrcp.pop %v326
    %v349 = vmul.f32 %v326, %v348
    %v350 = vsub.f32 1.0, %v349
    %v351 = vmul.f32 %v348, %v350
    %v352 = vadd.f32 %v348, %v351
    %vm353 = vweird.f32 %v326
    %vm354 = vweird.f32 %v348
    %vm355 = vmor %vm353, %vm354
    %v356 = vsel %vm355, %v348, %v352
    %v357 = vand.u32 2147483647, %v326
    %vm358 = vcmp.eq.f32.partialorder %v357, 8.507059e+37
    %v359 = vand.u32 %v326, 2147483648
    %v360 = vor.u32 1.1754944e-38, %v359
    %v361 = vsel %vm358, %v360, %v356
    %v362 = vmul.f32 %v252, %v361
    %v363 = vrcp.pop %v327
    %v364 = vmul.f32 %v327, %v363
    %v365 = vsub.f32 1.0, %v364
    %v366 = vmul.f32 %v363, %v365
    %v367 = vadd.f32 %v363, %v366
    %vm368 = vweird.f32 %v327
    %vm369 = vweird.f32 %v363
    %vm370 = vmor %vm368, %vm369
    %v371 = vsel %vm370, %v363, %v367
    %v372 = vand.u32 2147483647, %v327
    %vm373 = vcmp.eq.f32.partialorder %v372, 8.507059e+37
    %v374 = vand.u32 %v327, 2147483648
    %v375 = vor.u32 1.1754944e-38, %v374
    %v376 = vsel %vm373, %v375, %v371
    %v377 = vmul.f32 %v264, %v376
    %v378 = vrcp.pop %v328
    %v379 = vmul.f32 %v328, %v378
    %v380 = vsub.f32 1.0, %v379
    %v381 = vmul.f32 %v378, %v380
    %v382 = vadd.f32 %v378, %v381
    %vm383 = vweird.f32 %v328
    %vm384 = vweird.f32 %v378
    %vm385 = vmor %vm383, %vm384
    %v386 = vsel %vm385, %v378, %v382
    %v387 = vand.u32 2147483647, %v328
    %vm388 = vcmp.eq.f32.partialorder %v387, 8.507059e+37
    %v389 = vand.u32 %v328, 2147483648
    %v390 = vor.u32 1.1754944e-38, %v389
    %v391 = vsel %vm388, %v390, %v386
    %v392 = vmul.f32 %v276, %v391
    %v393 = vrcp.pop %v329
    %v394 = vmul.f32 %v329, %v393
    %v395 = vsub.f32 1.0, %v394
    %v396 = vmul.f32 %v393, %v395
    %v397 = vadd.f32 %v393, %v396
    %vm398 = vweird.f32 %v329
    %vm399 = vweird.f32 %v393
    %vm400 = vmor %vm398, %vm399
    %v401 = vsel %vm400, %v393, %v397
    %v402 = vand.u32 2147483647, %v329
    %vm403 = vcmp.eq.f32.partialorder %v402, 8.507059e+37
    %v404 = vand.u32 %v329, 2147483648
    %v405 = vor.u32 1.1754944e-38, %v404
    %v406 = vsel %vm403, %v405, %v401
    %v407 = vmul.f32 %v288, %v406
    %v408 = vrcp.pop %v330
    %v409 = vmul.f32 %v330, %v408
    %v410 = vsub.f32 1.0, %v409
    %v411 = vmul.f32 %v408, %v410
    %v412 = vadd.f32 %v408, %v411
    %vm413 = vweird.f32 %v330
    %vm414 = vweird.f32 %v408
    %vm415 = vmor %vm413, %vm414
    %v416 = vsel %vm415, %v408, %v412
    %v417 = vand.u32 2147483647, %v330
    %vm418 = vcmp.eq.f32.partialorder %v417, 8.507059e+37
    %v419 = vand.u32 %v330, 2147483648
    %v420 = vor.u32 1.1754944e-38, %v419
    %v421 = vsel %vm418, %v420, %v416
    %v422 = vmul.f32 %v300, %v421
    %v423 = vrcp.pop %v331
    %v424 = vmul.f32 %v331, %v423
    %v425 = vsub.f32 1.0, %v424
    %v426 = vmul.f32 %v423, %v425
    %v427 = vadd.f32 %v423, %v426
    %vm428 = vweird.f32 %v331
    %vm429 = vweird.f32 %v423
    %vm430 = vmor %vm428, %vm429
    %v431 = vsel %vm430, %v423, %v427
    %v432 = vand.u32 2147483647, %v331
    %vm433 = vcmp.eq.f32.partialorder %v432, 8.507059e+37
    %v434 = vand.u32 %v331, 2147483648
    %v435 = vor.u32 1.1754944e-38, %v434
    %v436 = vsel %vm433, %v435, %v431
    %v437 = vmul.f32 %v312, %v436
    %v438 = vrcp.pop %v332
    %v439 = vmul.f32 %v332, %v438
    %v440 = vsub.f32 1.0, %v439
    %v441 = vmul.f32 %v438, %v440
    %v442 = vadd.f32 %v438, %v441
    %vm443 = vweird.f32 %v332
    %vm444 = vweird.f32 %v438
    %vm445 = vmor %vm443, %vm444
    %v446 = vsel %vm445, %v438, %v442
    %v447 = vand.u32 2147483647, %v332
    %vm448 = vcmp.eq.f32.partialorder %v447, 8.507059e+37
    %v449 = vand.u32 %v332, 2147483648
    %v450 = vor.u32 1.1754944e-38, %v449
    %v451 = vsel %vm448, %v450, %v446
    %v452 = vmul.f32 %v324, %v451
    %vm461 = vcmask 1041409
    %v462 = vsel %vm461, %v362, %v347
    %vm463 = vcmask 1042434
    %v464 = vsel %vm463, %v377, %v462
    %vm465 = vcmask 1043459
    %v466 = vsel %vm465, %v392, %v464
    %vm467 = vcmask 1044484
    %v468 = vsel %vm467, %v407, %v466
    %vm469 = vcmask 1045509
    %v470 = vsel %vm469, %v422, %v468
    %vm471 = vcmask 1046534
    %v472 = vsel %vm471, %v437, %v470
    %vm473 = vcmask 1047559
    %v474 = vsel %vm473, %v452, %v472
    %476 = vst.msk [vmem:[#allocation2] sm:$0xff] %vm28, %v474
    %v477 = vlaneseq
    %v478 = vand.u32 %v477, 127
    %v479 = vlaneseq
    %v480 = vshrl.u32 %v479, 7
    %vm481 = vcmp.lt.s32.totalorder %v478, %v480
    %v482 = vlaneseq
    %v483 = vshrl.u32 %v482, 7
    %485 = vset.pattern.permute.xlu0 %v483
    %486 = vperm.xlu0 %485, %v347
    %v487 = vpop.permute.xlu0 %486
    %v488 = vlaneseq
    %v489 = vshrl.u32 %v488, 7
    %491 = vset.pattern.permute.xlu0 %v489
    %492 = vperm.xlu0 %491, %v362
    %v493 = vpop.permute.xlu0 %492
    %v494 = vlaneseq
    %v495 = vshrl.u32 %v494, 7
    %497 = vset.pattern.permute.xlu0 %v495
    %498 = vperm.xlu0 %497, %v377
    %v499 = vpop.permute.xlu0 %498
    %v500 = vlaneseq
    %v501 = vshrl.u32 %v500, 7
    %503 = vset.pattern.permute.xlu0 %v501
    %504 = vperm.xlu0 %503, %v392
    %v505 = vpop.permute.xlu0 %504
    %v506 = vlaneseq
    %v507 = vshrl.u32 %v506, 7
    %509 = vset.pattern.permute.xlu0 %v507
    %510 = vperm.xlu0 %509, %v407
    %v511 = vpop.permute.xlu0 %510
    %v512 = vlaneseq
    %v513 = vshrl.u32 %v512, 7
    %515 = vset.pattern.permute.xlu0 %v513
    %516 = vperm.xlu0 %515, %v422
    %v517 = vpop.permute.xlu0 %516
    %v518 = vlaneseq
    %v519 = vshrl.u32 %v518, 7
    %521 = vset.pattern.permute.xlu0 %v519
    %522 = vperm.xlu0 %521, %v437
    %v523 = vpop.permute.xlu0 %522
    %v524 = vlaneseq
    %v525 = vshrl.u32 %v524, 7
    %527 = vset.pattern.permute.xlu0 %v525
    %528 = vperm.xlu0 %527, %v452
    %v529 = vpop.permute.xlu0 %528
    %vm530 = vcmp.gt.f32.partialorder %v347, %v487
    %vm531 = vcmp.gt.f32.partialorder %v362, %v493
    %vm532 = vcmp.gt.f32.partialorder %v377, %v499
    %vm533 = vcmp.gt.f32.partialorder %v392, %v505
    %vm534 = vcmp.gt.f32.partialorder %v407, %v511
    %vm535 = vcmp.gt.f32.partialorder %v422, %v517
    %vm536 = vcmp.gt.f32.partialorder %v437, %v523
    %vm537 = vcmp.gt.f32.partialorder %v452, %v529
    %vm538 = vcmp.eq.f32.partialorder %v347, %v487
    %vm539 = vcmp.eq.f32.partialorder %v362, %v493
    %vm540 = vcmp.eq.f32.partialorder %v377, %v499
    %vm541 = vcmp.eq.f32.partialorder %v392, %v505
    %vm542 = vcmp.eq.f32.partialorder %v407, %v511
    %vm543 = vcmp.eq.f32.partialorder %v422, %v517
    %vm544 = vcmp.eq.f32.partialorder %v437, %v523
    %vm545 = vcmp.eq.f32.partialorder %v452, %v529
    %v546 = vsel %vm481, 1, 0
    %vm547 = vcmp.eq.s32.totalorder %v546, 1
    %vm548 = vmand %vm538, %vm547
    %vm549 = vmand %vm539, %vm547
    %vm550 = vmand %vm540, %vm547
    %vm551 = vmand %vm541, %vm547
    %vm552 = vmand %vm542, %vm547
    %vm553 = vmand %vm543, %vm547
    %vm554 = vmand %vm544, %vm547
    %vm555 = vmand %vm545, %vm547
    %vm556 = vmor %vm530, %vm548
    %vm557 = vmor %vm531, %vm549
    %vm558 = vmor %vm532, %vm550
    %vm559 = vmor %vm533, %vm551
    %vm560 = vmor %vm534, %vm552
    %vm561 = vmor %vm535, %vm553
    %vm562 = vmor %vm536, %vm554
    %vm563 = vmor %vm537, %vm555
    %v564 = vsel %vm556, 1, 0
    %v565 = vsel %vm557, 1, 0
    %v566 = vsel %vm558, 1, 0
    %v567 = vsel %vm559, 1, 0
    %v568 = vsel %vm560, 1, 0
    %v569 = vsel %vm561, 1, 0
    %v570 = vsel %vm562, 1, 0
    %v571 = vsel %vm563, 1, 0
    %v572 = vsel %vm28, %v564, 0
    %v573 = vand.u32 %v572, 65535
    %v574 = vshrl.u32 %v572, 16
    %v575 = vcvt.s32.f32 %v573
    %v576 = vcvt.s32.f32 %v574
    %577 = vadd.xlane.f32.xlu0 %v575
    %v578 = vpop.xlane.xlu0 %577
    %579 = vadd.xlane.f32.xlu0 %v576
    %v580 = vpop.xlane.xlu0 %579
    %v581 = vcvt.f32.s32 %v578
    %v582 = vcvt.f32.s32 %v580
    %v583 = vshll.u32 %v582, 16
    %v584 = vadd.s32 %v583, %v581
    %v585 = vsel %vm28, %v565, 0
    %v586 = vand.u32 %v585, 65535
    %v587 = vshrl.u32 %v585, 16
    %v588 = vcvt.s32.f32 %v586
    %v589 = vcvt.s32.f32 %v587
    %590 = vadd.xlane.f32.xlu0 %v588
    %v591 = vpop.xlane.xlu0 %590
    %592 = vadd.xlane.f32.xlu0 %v589
    %v593 = vpop.xlane.xlu0 %592
    %v594 = vcvt.f32.s32 %v591
    %v595 = vcvt.f32.s32 %v593
    %v596 = vshll.u32 %v595, 16
    %v597 = vadd.s32 %v596, %v594
    %v598 = vsel %vm28, %v566, 0
    %v599 = vand.u32 %v598, 65535
    %v600 = vshrl.u32 %v598, 16
    %v601 = vcvt.s32.f32 %v599
    %v602 = vcvt.s32.f32 %v600
    %603 = vadd.xlane.f32.xlu0 %v601
    %v604 = vpop.xlane.xlu0 %603
    %605 = vadd.xlane.f32.xlu0 %v602
    %v606 = vpop.xlane.xlu0 %605
    %v607 = vcvt.f32.s32 %v604
    %v608 = vcvt.f32.s32 %v606
    %v609 = vshll.u32 %v608, 16
    %v610 = vadd.s32 %v609, %v607
    %v611 = vsel %vm28, %v567, 0
    %v612 = vand.u32 %v611, 65535
    %v613 = vshrl.u32 %v611, 16
    %v614 = vcvt.s32.f32 %v612
    %v615 = vcvt.s32.f32 %v613
    %616 = vadd.xlane.f32.xlu0 %v614
    %v617 = vpop.xlane.xlu0 %616
    %618 = vadd.xlane.f32.xlu0 %v615
    %v619 = vpop.xlane.xlu0 %618
    %v620 = vcvt.f32.s32 %v617
    %v621 = vcvt.f32.s32 %v619
    %v622 = vshll.u32 %v621, 16
    %v623 = vadd.s32 %v622, %v620
    %v624 = vsel %vm28, %v568, 0
    %v625 = vand.u32 %v624, 65535
    %v626 = vshrl.u32 %v624, 16
    %v627 = vcvt.s32.f32 %v625
    %v628 = vcvt.s32.f32 %v626
    %629 = vadd.xlane.f32.xlu0 %v627
    %v630 = vpop.xlane.xlu0 %629
    %631 = vadd.xlane.f32.xlu0 %v628
    %v632 = vpop.xlane.xlu0 %631
    %v633 = vcvt.f32.s32 %v630
    %v634 = vcvt.f32.s32 %v632
    %v635 = vshll.u32 %v634, 16
    %v636 = vadd.s32 %v635, %v633
    %v637 = vsel %vm28, %v569, 0
    %v638 = vand.u32 %v637, 65535
    %v639 = vshrl.u32 %v637, 16
    %v640 = vcvt.s32.f32 %v638
    %v641 = vcvt.s32.f32 %v639
    %642 = vadd.xlane.f32.xlu0 %v640
    %v643 = vpop.xlane.xlu0 %642
    %644 = vadd.xlane.f32.xlu0 %v641
    %v645 = vpop.xlane.xlu0 %644
    %v646 = vcvt.f32.s32 %v643
    %v647 = vcvt.f32.s32 %v645
    %v648 = vshll.u32 %v647, 16
    %v649 = vadd.s32 %v648, %v646
    %v650 = vsel %vm28, %v570, 0
    %v651 = vand.u32 %v650, 65535
    %v652 = vshrl.u32 %v650, 16
    %v653 = vcvt.s32.f32 %v651
    %v654 = vcvt.s32.f32 %v652
    %655 = vadd.xlane.f32.xlu0 %v653
    %v656 = vpop.xlane.xlu0 %655
    %657 = vadd.xlane.f32.xlu0 %v654
    %v658 = vpop.xlane.xlu0 %657
    %v659 = vcvt.f32.s32 %v656
    %v660 = vcvt.f32.s32 %v658
    %v661 = vshll.u32 %v660, 16
    %v662 = vadd.s32 %v661, %v659
    %v663 = vsel %vm28, %v571, 0
    %v664 = vand.u32 %v663, 65535
    %v665 = vshrl.u32 %v663, 16
    %v666 = vcvt.s32.f32 %v664
    %v667 = vcvt.s32.f32 %v665
    %668 = vadd.xlane.f32.xlu0 %v666
    %v669 = vpop.xlane.xlu0 %668
    %670 = vadd.xlane.f32.xlu0 %v667
    %v671 = vpop.xlane.xlu0 %670
    %v672 = vcvt.f32.s32 %v669
    %v673 = vcvt.f32.s32 %v671
    %v674 = vshll.u32 %v673, 16
    %v675 = vadd.s32 %v674, %v672
    %v676 = vperm.slane %v584, %v478
    %v677 = vperm.slane %v597, %v478
    %v678 = vperm.slane %v610, %v478
    %v679 = vperm.slane %v623, %v478
    %v680 = vperm.slane %v636, %v478
    %v681 = vperm.slane %v649, %v478
    %v682 = vperm.slane %v662, %v478
    %v683 = vperm.slane %v675, %v478
    %v684 = vsel %vm461, %v677, %v676
    %v685 = vsel %vm463, %v678, %v684
    %v686 = vsel %vm465, %v679, %v685
    %v687 = vsel %vm467, %v680, %v686
    %v688 = vsel %vm469, %v681, %v687
    %v689 = vsel %vm471, %v682, %v688
    %v690 = vsel %vm473, %v683, %v689
    %691 = vst.msk [vmem:[#allocation4] sm:$0xff] %vm28, %v690
    // Predicated region
    $region6: #{tpu_custom_call.1} parent=1 // pred_check
      _
    $region7: #{tpu_custom_call.1} parent=1 // pred_check_branch
      %693 = sbr.rel (0) target = $region9
    $region8: #{tpu_custom_call.1} parent=1 // pred_region
      %695 = vsyncadd [#allocation3], 0
      %s697 = sshll.u32 [#allocation2], 4
      %s698 = int_to_ptr.vmem [resolvable:$true] %s697
      %s699 = sshll.u32 %s1, 4
      %s700 = int_to_ptr.hbm [resolvable:$true] %s699
      %702 = dma.vmem_to_hbm [thread:$0]  %s698, 128, %s700, [#allocation3]
    $region9: #{tpu_custom_call.1} parent=1 // pred_fallthru
      _
    // Predicated region
    $region10: #{tpu_custom_call.1} parent=1 // pred_check
      _
    $region11: #{tpu_custom_call.1} parent=1 // pred_check_branch
      %704 = sbr.rel (0) target = $region13
    $region12: #{tpu_custom_call.1} parent=1 // pred_region
      %706 = vsyncadd [#allocation5], 0
      %s708 = sshll.u32 [#allocation4], 4
      %s709 = int_to_ptr.vmem [resolvable:$true] %s708
      %s710 = sshll.u32 %s2, 4
      %s711 = int_to_ptr.hbm [resolvable:$true] %s710
      %713 = dma.vmem_to_hbm [thread:$0]  %s709, 128, %s711, [#allocation5]
    $region13: #{tpu_custom_call.1} parent=1 // pred_fallthru
      _
    // Predicated region
    $region14: #{tpu_custom_call.1} parent=1 // pred_check
      _
    $region15: #{tpu_custom_call.1} parent=1 // pred_check_branch
      %715 = sbr.rel (0) target = $region17
    $region16: #{tpu_custom_call.1} parent=1 // pred_region
      %717 = dma.done [#allocation3], 128
    $region17: #{tpu_custom_call.1} parent=1 // pred_fallthru
      _
    // Predicated region
    $region18: #{tpu_custom_call.1} parent=1 // pred_check
      _
    $region19: #{tpu_custom_call.1} parent=1 // pred_check_branch
      %719 = sbr.rel (0) target = $region21
    $region20: #{tpu_custom_call.1} parent=1 // pred_region
      %721 = dma.done [#allocation5], 128
    $region21: #{tpu_custom_call.1} parent=1 // pred_fallthru
      _
    %722 = vsyncpa [#allocation3], 1
    %723 = vsyncpa [#allocation5], 1

</llo_original>
